<compile_context>
chip_gen: v7x
topology: tpu7x:2x2x1
jax: 0.10.0
libtpu: 0.0.40
codegen_flags: <defaults>
</compile_context>

<pallas_src>
import jax
import jax.numpy as jnp
from jax.experimental import pallas as pl
from jax.experimental.pallas import tpu as pltpu


def _upper_encoder_kernel(x_ref, w_ref, b_ref, o_ref):
    # x_ref: (TB, C, HW)  -- HW on the lane axis (natural NCHW layout)
    # w_ref: (C, F)       -- pre-scaled by 1/HW (mean folded into weight)
    # b_ref: (1, F)
    # o_ref: (TB, F)
    # Spatial sum with f32 accumulation (XLU cross-lane reduce; no f32 copy
    # of the whole block is materialized).
    pooled = jnp.sum(x_ref[...], axis=-1, dtype=jnp.float32)          # (TB, C)
    out = jnp.dot(pooled, w_ref[...],
                  preferred_element_type=jnp.float32)                  # (TB, F)
    out = out + b_ref[...]
    o_ref[...] = out.astype(o_ref.dtype)


class ImageUpperEncoderPallas:
    """Concrete Pallas realization of AbstractBaseImageUpperEncoder."""

    # Per-x-block VMEM budget (bytes). The pipeline double-buffers it, so the
    # footprint is ~2x this plus the resident weight/bias/output tiles.
    # Chosen to stay comfortably under the 32 MiB scoped-VMEM limit we request
    # (safe on v5e/v6e/v7x).
    _X_BLOCK_BUDGET = 8 * 1024 * 1024

    def __init__(self, lower_feature_shape, feature_size, pretrained=True,
                 *args, **kwargs):
        self.lower_feature_shape = tuple(lower_feature_shape)  # (C, H, W)
        self.feature_size = feature_size
        c, h, w = self.lower_feature_shape
        self._hw = h * w

        # Deterministic parameter init (PyTorch nn.Linear-style uniform bounds).
        key = jax.random.PRNGKey(0)
        kw, kb = jax.random.split(key)
        bound = 1.0 / (c ** 0.5)
        self.weight = jax.random.uniform(
            kw, (c, feature_size), jnp.float32, -bound, bound)
        self.bias = jax.random.uniform(
            kb, (1, feature_size), jnp.float32, -bound, bound)
        # Fold the 1/HW mean-scale into the weight once (bias is NOT scaled).
        self._w_scaled = self.weight / float(self._hw)

    def _pick_batch_tile(self, b, itemsize):
        row_bytes = self._hw * self.lower_feature_shape[0] * itemsize
        tb = max(1, self._X_BLOCK_BUDGET // max(1, row_bytes))
        if tb >= b:
            return b, b  # single tile covering the whole batch, no padding
        # Keep the output block's second-to-last dim a multiple of 8.
        tb = max(8, (tb // 8) * 8)
        b_pad = ((b + tb - 1) // tb) * tb
        return tb, b_pad

    def __call__(self, x):
        # x: (B, C, H, W) NCHW, matching the PyTorch convention.
        b, c, h, w = x.shape
        assert (c, h, w) == self.lower_feature_shape
        hw = h * w
        f = self.feature_size

        # Free reshape only (contiguous); no transpose pass in the wrapper.
        x2 = x.reshape(b, c, hw)                               # (B, C, HW)

        tb, b_pad = self._pick_batch_tile(b, jnp.dtype(x.dtype).itemsize)
        if b_pad != b:
            x2 = jnp.pad(x2, ((0, b_pad - b), (0, 0), (0, 0)))
        grid = (b_pad // tb,)

        out = pl.pallas_call(
            _upper_encoder_kernel,
            out_shape=jax.ShapeDtypeStruct((b_pad, f), x.dtype),
            grid=grid,
            in_specs=[
                pl.BlockSpec((tb, c, hw), lambda i: (i, 0, 0)),   # streamed
                pl.BlockSpec((c, f), lambda i: (0, 0)),           # resident
                pl.BlockSpec((1, f), lambda i: (0, 0)),           # resident
            ],
            out_specs=pl.BlockSpec((tb, f), lambda i: (i, 0)),
            compiler_params=pltpu.CompilerParams(
                dimension_semantics=("parallel",),
                vmem_limit_bytes=32 << 20,
            ),
        )(x2, self._w_scaled, self.bias)

        if b_pad != b:
            out = out[:b]
        return out


if __name__ == "__main__":
    # Small shapes consistent with the module: lower feature map (C=4, 16, 16),
    # batch=2, feature_size=32.
    B, C, H, W = 2, 4, 16, 16
    F = 32

    key = jax.random.PRNGKey(0)
    x = jax.random.normal(key, (B, C, H, W), jnp.float32)

    enc = ImageUpperEncoderPallas(lower_feature_shape=(C, H, W),
                                  feature_size=F)
    out = enc(x)
    out = jax.block_until_ready(out)

    # Reference check in plain JAX (same math: mean-pool then linear).
    ref = jnp.mean(x.reshape(B, C, H * W), axis=-1) @ enc.weight + enc.bias
    assert out.shape == (B, F)
    assert jnp.allclose(out, ref, atol=1e-5, rtol=1e-5)

    print("KERNEL_OK")
</pallas_src>

<mosaic_0001>
module attributes {stable_mosaic.version = 11 : i64} {
  func.func @_upper_encoder_kernel(%arg0: i32, %arg1: memref<2x4x256xf32, #tpu.memory_space<vmem>>, %arg2: memref<4x32xf32, #tpu.memory_space<vmem>>, %arg3: memref<1x32xf32, #tpu.memory_space<vmem>>, %arg4: memref<2x32xf32, #tpu.memory_space<vmem>>) attributes {dimension_semantics = [#tpu.dimension_semantics<parallel>], iteration_bounds = array<i64: 1>, scalar_prefetch = 0 : i64, scratch_operands = 0 : i64, tpu.core_type = #tpu.core_type<tc>, window_params = [{transform_indices = @transform_0, window_bounds = array<i64: 2, 4, 256>}, {pipeline_mode = #tpu.pipeline_mode<synchronous>, transform_indices = @transform_1, window_bounds = array<i64: 4, 32>}, {pipeline_mode = #tpu.pipeline_mode<synchronous>, transform_indices = @transform_2, window_bounds = array<i64: 1, 32>}, {transform_indices = @transform_3, window_bounds = array<i64: 2, 32>}]} {
    %c0 = arith.constant 0 : index
    %c0_0 = arith.constant 0 : index
    %c0_1 = arith.constant 0 : index
    %0 = vector.load %arg1[%c0, %c0_0, %c0_1] : memref<2x4x256xf32, #tpu.memory_space<vmem>>, vector<2x4x256xf32>
    %cst = arith.constant dense<0.000000e+00> : vector<2x4xf32>
    %1 = vector.multi_reduction <add>, %0, %cst [2] : vector<2x4x256xf32> to vector<2x4xf32>
    %c0_2 = arith.constant 0 : index
    %c0_3 = arith.constant 0 : index
    %2 = vector.load %arg2[%c0_2, %c0_3] : memref<4x32xf32, #tpu.memory_space<vmem>>, vector<4x32xf32>
    %cst_4 = arith.constant dense<0.000000e+00> : vector<2x32xf32>
    %3 = tpu.matmul %1, %2, %cst_4 {dimension_numbers = #tpu.dot_dimension_numbers<[1], [0], [0], [1], [0, 0, 1, 1], [], []>} : vector<2x4xf32>, vector<4x32xf32>, vector<2x32xf32> -> vector<2x32xf32>
    %c0_5 = arith.constant 0 : index
    %c0_6 = arith.constant 0 : index
    %4 = vector.load %arg3[%c0_5, %c0_6] : memref<1x32xf32, #tpu.memory_space<vmem>>, vector<1x32xf32>
    %5 = vector.broadcast %4 : vector<1x32xf32> to vector<2x32xf32>
    %6 = arith.addf %3, %5 : vector<2x32xf32>
    %c0_7 = arith.constant 0 : index
    %c0_8 = arith.constant 0 : index
    %7 = vector.load %arg4[%c0_7, %c0_8] : memref<2x32xf32, #tpu.memory_space<vmem>>, vector<2x32xf32>
    tpu.vector_store %arg4[%c0_7, %c0_8], %6 {strides = array<i32>} : memref<2x32xf32, #tpu.memory_space<vmem>>, vector<2x32xf32>,
    return
  }
  func.func @transform_0(%arg0: i32) -> (i32, i32, i32) {
    %c0_i32 = arith.constant 0 : i32
    %c0_i32_0 = arith.constant 0 : i32
    %c0_i32_1 = arith.constant 0 : i32
    return %arg0, %c0_i32, %c0_i32_0 : i32, i32, i32
  }
  func.func @transform_1(%arg0: i32) -> (i32, i32) {
    %c0_i32 = arith.constant 0 : i32
    %c0_i32_0 = arith.constant 0 : i32
    %c0_i32_1 = arith.constant 0 : i32
    return %c0_i32, %c0_i32_0 : i32, i32
  }
  func.func @transform_2(%arg0: i32) -> (i32, i32) {
    %c0_i32 = arith.constant 0 : i32
    %c0_i32_0 = arith.constant 0 : i32
    %c0_i32_1 = arith.constant 0 : i32
    return %c0_i32, %c0_i32_0 : i32, i32
  }
  func.func @transform_3(%arg0: i32) -> (i32, i32) {
    %c0_i32 = arith.constant 0 : i32
    %c0_i32_0 = arith.constant 0 : i32
    return %arg0, %c0_i32 : i32, i32
  }
}

</mosaic_0001>

<llo_original>
// kernel: tpu_custom_call.1
$region0: #{tpu_custom_call.1}
  #allocation0 [shape = 'u32[]', space=smem, size = 0x4, offset = 0x4, fixed_abs, tag = 'smem constant byte address 0x4 - core index']
  #allocation1 [shape = 'u32[144,128]{1,0:T(1,128)}', space=vmem, size = 0x12000, scoped, tag = 'internal scratch']
  %s0 = inlined_call_operand.hbm [shape: f32[2,4,256], index: 0, kind: input, shape index: {}]
  %s1 = inlined_call_operand.hbm [shape: f32[4,32], index: 1, kind: input, shape index: {}]
  %s2 = inlined_call_operand.vmem [shape: f32[1,32], index: 2, kind: input, shape index: {}]
  %s3 = inlined_call_operand.hbm [shape: f32[2,32], index: 3, kind: output, shape index: {}]
  %s4 = sld [smem:[#allocation0]]
  $region30: #{tpu_custom_call.1} parent=0
    _
  %s6 = ssub.s32 1, %s4
  %s7 = scalar_select 0, %s6, %s4
  $region1: #{tpu_custom_call.1} parent=0
    #allocation2 [shape = 'u8[8192]{0}', space=vmem, size = 0x2000, scoped, tag = 'input window, operand 0, single buffered']
    #allocation3 [shape = 's32[1]{0}', space=sflag, size = 0x4, scoped, tag = 'scoped memory for tpu_custom_call.1']
    #allocation4 [shape = 's32[1]{0}', space=sflag, size = 0x4, scoped, tag = 'scoped memory for tpu_custom_call.1']
    #allocation5 [shape = 'u8[2048]{0}', space=vmem, size = 0x800, scoped, tag = 'input window, operand 1, single buffered']
    #allocation6 [shape = 's32[1]{0}', space=sflag, size = 0x4, scoped, tag = 'scoped memory for tpu_custom_call.1']
    #allocation7 [shape = 'u8[1024]{0}', space=vmem, size = 0x400, scoped, tag = 'output window, operand 0, single buffered']
    %8 = vsyncpa [#allocation3], 0
    %9 = vsyncpa [#allocation6], 0
    %10 = vsyncpa [#allocation4], 0
    // Predicated region
    $region2: #{tpu_custom_call.1} parent=1 // pred_check
      _
    $region3: #{tpu_custom_call.1} parent=1 // pred_check_branch
      %12 = sbr.rel (0) target = $region5
    $region4: #{tpu_custom_call.1} parent=1 // pred_region
      %s14 = ssub.s32 256, 256
      %15 = vsyncadd [#allocation3], %s14
      %s16 = sshll.u32 [#allocation2], 4
      %s17 = int_to_ptr.vmem [resolvable:$true] %s16
      %22 = dma.hbm_to_vmem [thread:$0]  %s0, 256, %s17, [#allocation3], 128, 128, 8
    $region5: #{tpu_custom_call.1} parent=1 // pred_fallthru
      _
    // Predicated region
    $region6: #{tpu_custom_call.1} parent=1 // pred_check
      _
    $region7: #{tpu_custom_call.1} parent=1 // pred_check_branch
      %24 = sbr.rel (0) target = $region9
    $region8: #{tpu_custom_call.1} parent=1 // pred_region
      %s26 = ssub.s32 64, 64
      %27 = vsyncadd [#allocation6], %s26
      %s29 = sshll.u32 [#allocation5], 4
      %s30 = int_to_ptr.vmem [resolvable:$true] %s29
      %32 = dma.hbm_to_vmem [thread:$0]  %s1, 64, %s30, [#allocation6]
    $region9: #{tpu_custom_call.1} parent=1 // pred_fallthru
      _
    // Predicated region
    $region10: #{tpu_custom_call.1} parent=1 // pred_check
      _
    $region11: #{tpu_custom_call.1} parent=1 // pred_check_branch
      %34 = sbr.rel (0) target = $region13
    $region12: #{tpu_custom_call.1} parent=1 // pred_region
      _
    $region13: #{tpu_custom_call.1} parent=1 // pred_fallthru
      _
    // Predicated region
    $region14: #{tpu_custom_call.1} parent=1 // pred_check
      _
    $region15: #{tpu_custom_call.1} parent=1 // pred_check_branch
      %36 = sbr.rel (0) target = $region17
    $region16: #{tpu_custom_call.1} parent=1 // pred_region
      %37 = dma.done [#allocation3], 256
    $region17: #{tpu_custom_call.1} parent=1 // pred_fallthru
      _
    // Predicated region
    $region18: #{tpu_custom_call.1} parent=1 // pred_check
      _
    $region19: #{tpu_custom_call.1} parent=1 // pred_check_branch
      %39 = sbr.rel (0) target = $region21
    $region20: #{tpu_custom_call.1} parent=1 // pred_region
      %40 = dma.done [#allocation6], 64
    $region21: #{tpu_custom_call.1} parent=1 // pred_fallthru
      _
    %v41 = vld [vmem:[#allocation2] sm:$0xff]
    %v42 = vld [vmem:[#allocation2 + $0x8] sm:$0xff]
    %v45 = vcombine.high %v41, %v41
    %v46 = vcombine.high %v42, %v42
    %vm49 = vcmask 1043456
    %v50 = vsel %vm49, %v41, 0.0
    %v51 = vsel %vm49, %v45, 0.0
    %v52 = vadd.f32 %v50, %v51
    %53 = vadd.xlane.f32.xlu0 %v52
    %v54 = vpop.xlane.xlu0 %53
    %v55 = vsel %vm49, %v42, 0.0
    %v56 = vsel %vm49, %v46, 0.0
    %v57 = vadd.f32 %v55, %v56
    %58 = vadd.xlane.f32.xlu0 %v57
    %v59 = vpop.xlane.xlu0 %58
    %v60 = vld [vmem:[#allocation5] sm:$0xf]
    %v61 = vld [vmem:[%s2] sm:$0x1]
    %v63 = vlaneseq
    %v64 = vshrl.u32 %v63, 7
    %v65 = vsub.s32 0, %v64
    %v66 = vrot.slane %v61, %v65
    %v70 = vlaneseq
    %v71 = vand.u32 %v70, 127
    %v72 = vlaneseq
    %v73 = vshrl.u32 %v72, 7
    %v74 = vsub.s32 %v71, %v73
    %v75 = vrot.slane %v54, %v74
    %v76 = vlaneseq
    %v77 = vshrl.u32 %v76, 7
    %v78 = vsub.s32 %v71, %v77
    %v79 = vrot.slane %v59, %v78
    %vm80 = vcmask 1041409
    %v81 = vsel %vm80, %v79, %v75
    %vm82 = vcmask 31744
    %v83 = vsel %vm82, %v81, 0
    %v86 = vsel %vm49, %v60, 0
    %88 = vmatprep.subr.mxu0 0.0
    %89 = vmatpush1.msra.mxu0 %v86
    %90 = vmatprep.subr.mxu0 0.0
    %91 = vmatpush1.msra.mxu0 0.0
    %92 = vmatprep.subr.mxu0 0.0
    %93 = vmatpush1.msra.mxu0 0.0
    %94 = vmatprep.subr.mxu0 0.0
    %95 = vmatpush1.msra.mxu0 0.0
    %96 = vmatprep.subr.mxu0 0.0
    %97 = vmatpush1.msra.mxu0 0.0
    %98 = vmatprep.subr.mxu0 0.0
    %99 = vmatpush1.msra.mxu0 0.0
    %100 = vmatprep.subr.mxu0 0.0
    %101 = vmatpush1.msra.mxu0 0.0
    %102 = vmatprep.subr.mxu0 0.0
    %103 = vmatpush1.msra.mxu0 0.0
    %104 = vmatprep.subr.mxu0 0.0
    %105 = vmatpush1.msra.mxu0 0.0
    %106 = vmatprep.subr.mxu0 0.0
    %107 = vmatpush1.msra.mxu0 0.0
    %108 = vmatprep.subr.mxu0 0.0
    %109 = vmatpush1.msra.mxu0 0.0
    %110 = vmatprep.subr.mxu0 0.0
    %111 = vmatpush1.msra.mxu0 0.0
    %112 = vmatprep.subr.mxu0 0.0
    %113 = vmatpush1.msra.mxu0 0.0
    %114 = vmatprep.subr.mxu0 0.0
    %115 = vmatpush1.msra.mxu0 0.0
    %116 = vmatprep.subr.mxu0 0.0
    %117 = vmatpush1.msra.mxu0 0.0
    %118 = vmatprep.subr.mxu0 0.0
    %119 = vmatpush1.msra.mxu0 0.0
    %120 = vmatprep.subr.mxu0 0.0
    %121 = vmatpush1.msra.mxu0 0.0
    %122 = vmatprep.subr.mxu0 0.0
    %123 = vmatpush1.msra.mxu0 0.0
    %124 = vmatprep.subr.mxu0 0.0
    %125 = vmatpush1.msra.mxu0 0.0
    %126 = vmatprep.subr.mxu0 0.0
    %127 = vmatpush1.msra.mxu0 0.0
    %128 = vmatprep.subr.mxu0 0.0
    %129 = vmatpush1.msra.mxu0 0.0
    %130 = vmatprep.subr.mxu0 0.0
    %131 = vmatpush1.msra.mxu0 0.0
    %132 = vmatprep.subr.mxu0 0.0
    %133 = vmatpush1.msra.mxu0 0.0
    %134 = vmatprep.subr.mxu0 0.0
    %135 = vmatpush1.msra.mxu0 0.0
    %136 = vmatprep.subr.mxu0 0.0
    %137 = vmatpush1.msra.mxu0 0.0
    %138 = vmatprep.subr.mxu0 0.0
    %139 = vmatpush1.msra.mxu0 0.0
    %140 = vmatprep.subr.mxu0 0.0
    %141 = vmatpush1.msra.mxu0 0.0
    %142 = vmatprep.subr.mxu0 0.0
    %143 = vmatpush1.msra.mxu0 0.0
    %144 = vmatprep.subr.mxu0 0.0
    %145 = vmatpush1.msra.mxu0 0.0
    %146 = vmatprep.subr.mxu0 0.0
    %147 = vmatpush1.msra.mxu0 0.0
    %148 = vmatprep.subr.mxu0 0.0
    %149 = vmatpush1.msra.mxu0 0.0
    %150 = vmatprep.subr.mxu0 0.0
    %151 = vmatpush1.msra.mxu0 0.0
    %152 = vmatprep.mubr.f32.mxu0 0.0
    %153 = vmatmul.mubr.f32.gmra.mrb[0].mxu0 %v83
    %v154 = vpop.f32.mrb[0].mxu0
    %v155 = vadd.f32 %v66, %v154
    %v156 = vpop.f32.mrb[0].mxu0
    %157 = vdwg.mxu0
    %vm158 = vcmask 254976
    %159 = vst.msk [vmem:[#allocation7] sm:$0x3] %vm158, %v155
    // Predicated region
    $region22: #{tpu_custom_call.1} parent=1 // pred_check
      _
    $region23: #{tpu_custom_call.1} parent=1 // pred_check_branch
      %161 = sbr.rel (0) target = $region25
    $region24: #{tpu_custom_call.1} parent=1 // pred_region
      %s163 = ssub.s32 32, 32
      %164 = vsyncadd [#allocation4], %s163
      %s166 = sshll.u32 [#allocation7], 4
      %s167 = int_to_ptr.vmem [resolvable:$true] %s166
      %169 = dma.vmem_to_hbm [thread:$0]  %s167, 32, %s3, [#allocation4]
    $region25: #{tpu_custom_call.1} parent=1 // pred_fallthru
      _
    // Predicated region
    $region26: #{tpu_custom_call.1} parent=1 // pred_check
      _
    $region27: #{tpu_custom_call.1} parent=1 // pred_check_branch
      %171 = sbr.rel (0) target = $region29
    $region28: #{tpu_custom_call.1} parent=1 // pred_region
      %172 = dma.done [#allocation4], 32
    $region29: #{tpu_custom_call.1} parent=1 // pred_fallthru
      _
    %173 = vsyncpa [#allocation3], 1
    %174 = vsyncpa [#allocation6], 1
    %175 = vsyncpa [#allocation4], 1

</llo_original>
